<compile_context>
chip_gen: v7x
topology: tpu7x:2x2x1
jax: 0.10.0
libtpu: 0.0.40
codegen_flags: <defaults>
</compile_context>

<pallas_src>
import math

import jax
import jax.numpy as jnp
from jax.experimental import pallas as pl
from jax.experimental.pallas import tpu as pltpu


def _round_up(x: int, m: int) -> int:
    return -(-x // m) * m


def make_gru_kernel(n_layers: int, hidden_size: int, output_size: int,
                    in_max: int, out_padded: int):
    H = hidden_size

    def kernel(x_ref, wih_ref, bias_ref, headw_ref, headb_ref, out_ref):
        # x_ref:    (1, in_max)             input row (zero-padded if needed)
        # wih_ref:  (n_layers, in_max, 3H)  packed ih gate weights, order r|z|n
        # bias_ref: (n_layers, 1, 4H)       [b_r+bhh_r | b_z+bhh_z | bih_n | bhh_n]
        # headw_ref:(H, output_size)        fused l1_w @ l2_w
        # headb_ref:(1, output_size)        fused l1_b @ l2_w + l2_b
        # out_ref:  (1, out_padded)         [h_0 | h_1 | ... | dense | 0 pad]
        cur = x_ref[...]
        pieces = []
        h_new = None
        for l in range(n_layers):
            # Single fused gate matmul: (1, in) @ (in, 3H) -> (1, 3H)
            gi = jnp.dot(cur, wih_ref[l], preferred_element_type=jnp.float32)
            b = bias_ref[l]  # (1, 4H)

            # h0 == 0  =>  gh_* == bhh_*  (already folded into the bias slab)
            rz = jax.nn.sigmoid(gi[:, : 2 * H] + b[:, : 2 * H])  # one EUP op
            r = rz[:, :H]
            z = rz[:, H:2 * H]
            n = jnp.tanh(gi[:, 2 * H:3 * H] + b[:, 2 * H:3 * H] + r * b[:, 3 * H:4 * H])
            h_new = (1.0 - z) * n  # + z * h0, with h0 == 0
            pieces.append(h_new)

            if in_max > H:
                cur = jnp.concatenate(
                    [h_new, jnp.zeros((1, in_max - H), jnp.float32)], axis=1)
            else:
                cur = h_new

        # Fused dense heads: one dot instead of two.
        dense = jnp.dot(h_new, headw_ref[...],
                        preferred_element_type=jnp.float32) + headb_ref[...]
        pieces.append(dense)

        pad = out_padded - (n_layers * H + output_size)
        if pad:
            pieces.append(jnp.zeros((1, pad), jnp.float32))

        # Single lane-dense (multiple-of-128) store.
        out_ref[...] = jnp.concatenate(pieces, axis=1)

    return kernel


def pack_params(params, *, input_size, hidden_size, n_layers):
    """Pack the 12 per-layer / head params into 4 lane-dense slabs."""
    H = hidden_size
    in_max = max(input_size, hidden_size)

    wih_all, bias_all = [], []
    for l in range(n_layers):
        in_l = input_size if l == 0 else hidden_size
        wih = params[f"wih_{l}"]          # (3, in_l, H), gate order r, z, n
        w_cat = jnp.concatenate([wih[0], wih[1], wih[2]], axis=1)  # (in_l, 3H)
        if in_l < in_max:
            w_cat = jnp.concatenate(
                [w_cat, jnp.zeros((in_max - in_l, 3 * H), jnp.float32)], axis=0)
        wih_all.append(w_cat)

        bih = params[f"bih_{l}"]          # (3, 1, H)
        bhh = params[f"bhh_{l}"]          # (3, 1, H)
        b = jnp.concatenate(
            [bih[0] + bhh[0], bih[1] + bhh[1], bih[2], bhh[2]], axis=1)  # (1, 4H)
        bias_all.append(b)

    wih_all = jnp.stack(wih_all, axis=0)    # (n_layers, in_max, 3H)
    bias_all = jnp.stack(bias_all, axis=0)  # (n_layers, 1, 4H)

    # Algebraic fusion of the two linear heads (no nonlinearity between them).
    head_w = params["l1_w"] @ params["l2_w"]                         # (H, out)
    head_b = params["l1_b"] @ params["l2_w"] + params["l2_b"]        # (1, out)
    return wih_all, bias_all, head_w, head_b


def gru_forward(x, params, *, input_size, n_layers, hidden_size, output_size):
    """x: (1, input_size). Returns (dense (1, out), hidden (n_layers, 1, H))."""
    H = hidden_size
    in_max = max(input_size, hidden_size)
    out_total = n_layers * H + output_size
    out_padded = _round_up(out_total, 128)

    if input_size < in_max:
        x = jnp.concatenate(
            [x, jnp.zeros((1, in_max - input_size), jnp.float32)], axis=1)

    wih_all, bias_all, head_w, head_b = pack_params(
        params, input_size=input_size, hidden_size=hidden_size, n_layers=n_layers)

    kernel = make_gru_kernel(n_layers, hidden_size, output_size, in_max, out_padded)
    vmem = lambda: pl.BlockSpec(memory_space=pltpu.MemorySpace.VMEM)

    out = pl.pallas_call(
        kernel,
        out_shape=jax.ShapeDtypeStruct((1, out_padded), jnp.float32),
        in_specs=[vmem() for _ in range(5)],
        out_specs=vmem(),
    )(x, wih_all, bias_all, head_w, head_b)

    hidden = out[0, : n_layers * H].reshape(n_layers, 1, H)
    dense = out[:, n_layers * H: n_layers * H + output_size]
    return dense, hidden


def init_params(key, input_size, hidden_size, output_size, n_layers):
    """Deterministic PyTorch-style uniform(-1/sqrt(H), 1/sqrt(H)) init."""
    params = {}
    bound = 1.0 / math.sqrt(hidden_size)

    def uni(k, shape):
        return jax.random.uniform(k, shape, jnp.float32, minval=-bound, maxval=bound)

    for l in range(n_layers):
        in_l = input_size if l == 0 else hidden_size
        key, k1, k2, k3, k4 = jax.random.split(key, 5)
        params[f"wih_{l}"] = uni(k1, (3, in_l, hidden_size))
        params[f"whh_{l}"] = uni(k2, (3, hidden_size, hidden_size))
        params[f"bih_{l}"] = uni(k3, (3, 1, hidden_size))
        params[f"bhh_{l}"] = uni(k4, (3, 1, hidden_size))

    key, k1, k2, k3, k4 = jax.random.split(key, 5)
    params["l1_w"] = uni(k1, (hidden_size, hidden_size))
    params["l1_b"] = uni(k2, (1, hidden_size))
    params["l2_w"] = uni(k3, (hidden_size, output_size))
    params["l2_b"] = uni(k4, (1, output_size))
    return params


def reference_forward(x, params, *, n_layers, hidden_size):
    """Pure-JAX reference of the ORIGINAL (unfused) math, zero initial hidden."""
    H = hidden_size
    hiddens = []
    cur = x
    for l in range(n_layers):
        h = jnp.zeros((1, H), jnp.float32)
        wih, whh = params[f"wih_{l}"], params[f"whh_{l}"]
        bih, bhh = params[f"bih_{l}"], params[f"bhh_{l}"]
        gi_r = cur @ wih[0] + bih[0]
        gi_z = cur @ wih[1] + bih[1]
        gi_n = cur @ wih[2] + bih[2]
        gh_r = h @ whh[0] + bhh[0]
        gh_z = h @ whh[1] + bhh[1]
        gh_n = h @ whh[2] + bhh[2]
        r = jax.nn.sigmoid(gi_r + gh_r)
        z = jax.nn.sigmoid(gi_z + gh_z)
        n = jnp.tanh(gi_n + r * gh_n)
        h_new = (1.0 - z) * n + z * h
        hiddens.append(h_new)
        cur = h_new
    d = cur @ params["l1_w"] + params["l1_b"]
    d = d @ params["l2_w"] + params["l2_b"]
    return d, jnp.stack(hiddens, axis=0)


if __name__ == "__main__":
    input_size = 32
    hidden_size = 32
    output_size = 16
    n_layers = 2

    key = jax.random.PRNGKey(0)
    key, xkey, pkey = jax.random.split(key, 3)

    # Any x whose total size is input_size; forward does x.view(1, 1, -1).
    x = jax.random.normal(xkey, (input_size,), dtype=jnp.float32).reshape(1, input_size)
    params = init_params(pkey, input_size, hidden_size, output_size, n_layers)

    dense, hidden = gru_forward(
        x, params, input_size=input_size, n_layers=n_layers,
        hidden_size=hidden_size, output_size=output_size)
    jax.block_until_ready((dense, hidden))

    dense_ref, hidden_ref = reference_forward(
        x, params, n_layers=n_layers, hidden_size=hidden_size)

    assert dense.shape == (1, output_size)
    assert hidden.shape == (n_layers, 1, hidden_size)
    assert jnp.allclose(dense, dense_ref, atol=1e-4, rtol=1e-4)
    assert jnp.allclose(hidden, hidden_ref, atol=1e-4, rtol=1e-4)

    print("KERNEL_OK")
</pallas_src>

<mosaic_0001>
module attributes {stable_mosaic.version = 11 : i64} {
  func.func @kernel(%arg0: memref<1x32xf32, #tpu.memory_space<vmem>>, %arg1: memref<2x32x96xf32, #tpu.memory_space<vmem>>, %arg2: memref<2x1x128xf32, #tpu.memory_space<vmem>>, %arg3: memref<32x16xf32, #tpu.memory_space<vmem>>, %arg4: memref<1x16xf32, #tpu.memory_space<vmem>>, %arg5: memref<1x128xf32, #tpu.memory_space<vmem>>) attributes {dimension_semantics = [], scalar_prefetch = 0 : i64, scratch_operands = 0 : i64, tpu.core_type = #tpu.core_type<tc>} {
    %c0 = arith.constant 0 : index
    %c0_0 = arith.constant 0 : index
    %0 = vector.load %arg0[%c0, %c0_0] : memref<1x32xf32, #tpu.memory_space<vmem>>, vector<1x32xf32>
    %c0_1 = arith.constant 0 : index
    %c0_2 = arith.constant 0 : index
    %c0_3 = arith.constant 0 : index
    %1 = vector.load %arg1[%c0_1, %c0_2, %c0_3] : memref<2x32x96xf32, #tpu.memory_space<vmem>>, vector<1x32x96xf32>
    %2 = vector.shape_cast %1 : vector<1x32x96xf32> to vector<32x96xf32>
    %cst = arith.constant dense<0.000000e+00> : vector<1x96xf32>
    %3 = tpu.matmul %0, %2, %cst {dimension_numbers = #tpu.dot_dimension_numbers<[1], [0], [0], [1], [0, 0, 1, 1], [], []>} : vector<1x32xf32>, vector<32x96xf32>, vector<1x96xf32> -> vector<1x96xf32>
    %c0_4 = arith.constant 0 : index
    %c0_5 = arith.constant 0 : index
    %c0_6 = arith.constant 0 : index
    %4 = vector.load %arg2[%c0_4, %c0_5, %c0_6] : memref<2x1x128xf32, #tpu.memory_space<vmem>>, vector<1x1x128xf32>
    %5 = vector.shape_cast %4 : vector<1x1x128xf32> to vector<1x128xf32>
    %6 = vector.extract_strided_slice %3 {offsets = [0, 0], sizes = [1, 64], strides = [1, 1]} : vector<1x96xf32> to vector<1x64xf32>
    %7 = vector.extract_strided_slice %5 {offsets = [0, 0], sizes = [1, 64], strides = [1, 1]} : vector<1x128xf32> to vector<1x64xf32>
    %8 = arith.addf %6, %7 : vector<1x64xf32>
    %9 = arith.negf %8 : vector<1x64xf32>
    %10 = math.exp %9 : vector<1x64xf32>
    %cst_7 = arith.constant 1.000000e+00 : f32
    %11 = vector.broadcast %cst_7 : f32 to vector<1x64xf32>
    %12 = arith.addf %11, %10 : vector<1x64xf32>
    %13 = arith.divf %11, %12 : vector<1x64xf32>
    %14 = vector.extract_strided_slice %13 {offsets = [0, 0], sizes = [1, 32], strides = [1, 1]} : vector<1x64xf32> to vector<1x32xf32>
    %15 = vector.extract_strided_slice %13 {offsets = [0, 32], sizes = [1, 32], strides = [1, 1]} : vector<1x64xf32> to vector<1x32xf32>
    %16 = vector.extract_strided_slice %3 {offsets = [0, 64], sizes = [1, 32], strides = [1, 1]} : vector<1x96xf32> to vector<1x32xf32>
    %17 = vector.extract_strided_slice %5 {offsets = [0, 64], sizes = [1, 32], strides = [1, 1]} : vector<1x128xf32> to vector<1x32xf32>
    %18 = arith.addf %16, %17 : vector<1x32xf32>
    %19 = vector.extract_strided_slice %5 {offsets = [0, 96], sizes = [1, 32], strides = [1, 1]} : vector<1x128xf32> to vector<1x32xf32>
    %20 = arith.mulf %14, %19 : vector<1x32xf32>
    %21 = arith.addf %18, %20 : vector<1x32xf32>
    %22 = math.tanh %21 : vector<1x32xf32>
    %cst_8 = arith.constant 1.000000e+00 : f32
    %23 = vector.broadcast %cst_8 : f32 to vector<1x32xf32>
    %24 = arith.subf %23, %15 : vector<1x32xf32>
    %25 = arith.mulf %24, %22 : vector<1x32xf32>
    %c1 = arith.constant 1 : index
    %c0_9 = arith.constant 0 : index
    %c0_10 = arith.constant 0 : index
    %26 = vector.load %arg1[%c1, %c0_9, %c0_10] : memref<2x32x96xf32, #tpu.memory_space<vmem>>, vector<1x32x96xf32>
    %27 = vector.shape_cast %26 : vector<1x32x96xf32> to vector<32x96xf32>
    %cst_11 = arith.constant dense<0.000000e+00> : vector<1x96xf32>
    %28 = tpu.matmul %25, %27, %cst_11 {dimension_numbers = #tpu.dot_dimension_numbers<[1], [0], [0], [1], [0, 0, 1, 1], [], []>} : vector<1x32xf32>, vector<32x96xf32>, vector<1x96xf32> -> vector<1x96xf32>
    %c1_12 = arith.constant 1 : index
    %c0_13 = arith.constant 0 : index
    %c0_14 = arith.constant 0 : index
    %29 = vector.load %arg2[%c1_12, %c0_13, %c0_14] : memref<2x1x128xf32, #tpu.memory_space<vmem>>, vector<1x1x128xf32>
    %30 = vector.shape_cast %29 : vector<1x1x128xf32> to vector<1x128xf32>
    %31 = vector.extract_strided_slice %28 {offsets = [0, 0], sizes = [1, 64], strides = [1, 1]} : vector<1x96xf32> to vector<1x64xf32>
    %32 = vector.extract_strided_slice %30 {offsets = [0, 0], sizes = [1, 64], strides = [1, 1]} : vector<1x128xf32> to vector<1x64xf32>
    %33 = arith.addf %31, %32 : vector<1x64xf32>
    %34 = arith.negf %33 : vector<1x64xf32>
    %35 = math.exp %34 : vector<1x64xf32>
    %cst_15 = arith.constant 1.000000e+00 : f32
    %36 = vector.broadcast %cst_15 : f32 to vector<1x64xf32>
    %37 = arith.addf %36, %35 : vector<1x64xf32>
    %38 = arith.divf %36, %37 : vector<1x64xf32>
    %39 = vector.extract_strided_slice %38 {offsets = [0, 0], sizes = [1, 32], strides = [1, 1]} : vector<1x64xf32> to vector<1x32xf32>
    %40 = vector.extract_strided_slice %38 {offsets = [0, 32], sizes = [1, 32], strides = [1, 1]} : vector<1x64xf32> to vector<1x32xf32>
    %41 = vector.extract_strided_slice %28 {offsets = [0, 64], sizes = [1, 32], strides = [1, 1]} : vector<1x96xf32> to vector<1x32xf32>
    %42 = vector.extract_strided_slice %30 {offsets = [0, 64], sizes = [1, 32], strides = [1, 1]} : vector<1x128xf32> to vector<1x32xf32>
    %43 = arith.addf %41, %42 : vector<1x32xf32>
    %44 = vector.extract_strided_slice %30 {offsets = [0, 96], sizes = [1, 32], strides = [1, 1]} : vector<1x128xf32> to vector<1x32xf32>
    %45 = arith.mulf %39, %44 : vector<1x32xf32>
    %46 = arith.addf %43, %45 : vector<1x32xf32>
    %47 = math.tanh %46 : vector<1x32xf32>
    %cst_16 = arith.constant 1.000000e+00 : f32
    %48 = vector.broadcast %cst_16 : f32 to vector<1x32xf32>
    %49 = arith.subf %48, %40 : vector<1x32xf32>
    %50 = arith.mulf %49, %47 : vector<1x32xf32>
    %c0_17 = arith.constant 0 : index
    %c0_18 = arith.constant 0 : index
    %51 = vector.load %arg3[%c0_17, %c0_18] : memref<32x16xf32, #tpu.memory_space<vmem>>, vector<32x16xf32>
    %cst_19 = arith.constant dense<0.000000e+00> : vector<1x16xf32>
    %52 = tpu.matmul %50, %51, %cst_19 {dimension_numbers = #tpu.dot_dimension_numbers<[1], [0], [0], [1], [0, 0, 1, 1], [], []>} : vector<1x32xf32>, vector<32x16xf32>, vector<1x16xf32> -> vector<1x16xf32>
    %c0_20 = arith.constant 0 : index
    %c0_21 = arith.constant 0 : index
    %53 = vector.load %arg4[%c0_20, %c0_21] : memref<1x16xf32, #tpu.memory_space<vmem>>, vector<1x16xf32>
    %54 = arith.addf %52, %53 : vector<1x16xf32>
    %cst_22 = arith.constant 0.000000e+00 : f32
    %55 = vector.broadcast %cst_22 : f32 to vector<1x48xf32>
    %56 = tpu.concatenate %25, %50, %54, %55 in 1 : vector<1x32xf32>, vector<1x32xf32>, vector<1x16xf32>, vector<1x48xf32> -> vector<1x128xf32>
    %c0_23 = arith.constant 0 : index
    %c0_24 = arith.constant 0 : index
    %57 = vector.load %arg5[%c0_23, %c0_24] : memref<1x128xf32, #tpu.memory_space<vmem>>, vector<1x128xf32>
    tpu.vector_store %arg5[%c0_23, %c0_24], %56 {strides = array<i32>} : memref<1x128xf32, #tpu.memory_space<vmem>>, vector<1x128xf32>,
    return
  }
}

</mosaic_0001>

<llo_original>
// kernel: tpu_custom_call.1
$region0: #{tpu_custom_call.1}
  #allocation0 [shape = 'u32[]', space=smem, size = 0x4, offset = 0x4, fixed_abs, tag = 'smem constant byte address 0x4 - core index']
  #allocation1 [shape = 'u32[144,128]{1,0:T(1,128)}', space=vmem, size = 0x12000, scoped, tag = 'internal scratch']
  %s0 = inlined_call_operand.vmem [shape: f32[1,32], index: 0, kind: input, shape index: {}]
  %s1 = inlined_call_operand.hbm [shape: f32[2,32,96], index: 1, kind: input, shape index: {}]
  %s2 = inlined_call_operand.vmem [shape: f32[2,1,128], index: 2, kind: input, shape index: {}]
  %s3 = inlined_call_operand.vmem [shape: f32[32,16], index: 3, kind: input, shape index: {}]
  %s4 = inlined_call_operand.vmem [shape: f32[1,16], index: 4, kind: input, shape index: {}]
  %s5 = inlined_call_operand.hbm [shape: f32[1,128], index: 5, kind: output, shape index: {}]
  %s6 = sld [smem:[#allocation0]]
  $region34: #{tpu_custom_call.1} parent=0
    _
  %s8 = ssub.s32 1, %s6
  %s9 = scalar_select 0, %s8, %s6
  $region1: #{tpu_custom_call.1} parent=0
    #allocation2 [shape = 'u8[32768]{0}', space=vmem, size = 0x8000, scoped, tag = 'input window, operand 1, single buffered']
    #allocation3 [shape = 's32[1]{0}', space=sflag, size = 0x4, scoped, tag = 'scoped memory for tpu_custom_call.1']
    #allocation4 [shape = 's32[1]{0}', space=sflag, size = 0x4, scoped, tag = 'scoped memory for tpu_custom_call.1']
    #allocation5 [shape = 'u8[512]{0}', space=vmem, size = 0x400, scoped, tag = 'output window, operand 0, single buffered']
    %10 = vsyncpa [#allocation3], 0
    %11 = vsyncpa [#allocation4], 0
    // Predicated region
    $region2: #{tpu_custom_call.1} parent=1 // pred_check
      _
    $region3: #{tpu_custom_call.1} parent=1 // pred_check_branch
      %13 = sbr.rel (0) target = $region5
    $region4: #{tpu_custom_call.1} parent=1 // pred_region
      _
    $region5: #{tpu_custom_call.1} parent=1 // pred_fallthru
      _
    // Predicated region
    $region6: #{tpu_custom_call.1} parent=1 // pred_check
      _
    $region7: #{tpu_custom_call.1} parent=1 // pred_check_branch
      %15 = sbr.rel (0) target = $region9
    $region8: #{tpu_custom_call.1} parent=1 // pred_region
      %s17 = ssub.s32 1024, 1024
      %18 = vsyncadd [#allocation3], %s17
      %s19 = sshll.u32 [#allocation2], 4
      %s20 = int_to_ptr.vmem [resolvable:$true] %s19
      %25 = dma.hbm_to_vmem [thread:$0]  %s1, 1024, %s20, [#allocation3], 128, 128, 8
    $region9: #{tpu_custom_call.1} parent=1 // pred_fallthru
      _
    // Predicated region
    $region10: #{tpu_custom_call.1} parent=1 // pred_check
      _
    $region11: #{tpu_custom_call.1} parent=1 // pred_check_branch
      %27 = sbr.rel (0) target = $region13
    $region12: #{tpu_custom_call.1} parent=1 // pred_region
      _
    $region13: #{tpu_custom_call.1} parent=1 // pred_fallthru
      _
    // Predicated region
    $region14: #{tpu_custom_call.1} parent=1 // pred_check
      _
    $region15: #{tpu_custom_call.1} parent=1 // pred_check_branch
      %29 = sbr.rel (0) target = $region17
    $region16: #{tpu_custom_call.1} parent=1 // pred_region
      _
    $region17: #{tpu_custom_call.1} parent=1 // pred_fallthru
      _
    // Predicated region
    $region18: #{tpu_custom_call.1} parent=1 // pred_check
      _
    $region19: #{tpu_custom_call.1} parent=1 // pred_check_branch
      %31 = sbr.rel (0) target = $region21
    $region20: #{tpu_custom_call.1} parent=1 // pred_region
      _
    $region21: #{tpu_custom_call.1} parent=1 // pred_fallthru
      _
    // Predicated region
    $region22: #{tpu_custom_call.1} parent=1 // pred_check
      _
    $region23: #{tpu_custom_call.1} parent=1 // pred_check_branch
      %33 = sbr.rel (0) target = $region25
    $region24: #{tpu_custom_call.1} parent=1 // pred_region
      %34 = dma.done [#allocation3], 1024
    $region25: #{tpu_custom_call.1} parent=1 // pred_fallthru
      _
    %v35 = vld [vmem:[%s0] sm:$0x1]
    %v36 = vld [vmem:[#allocation2] sm:$0xff]
    %v37 = vld [vmem:[#allocation2 + $0x8] sm:$0xff]
    %v38 = vld [vmem:[#allocation2 + $0x10] sm:$0xff]
    %v39 = vld [vmem:[#allocation2 + $0x18] sm:$0xff]
    %vm40 = vcmask 261120
    %v42 = vsel %vm40, %v35, 0
    %44 = vmatprep.subr.mxu0 0.0
    %45 = vmatpush1.msra.mxu0 %v36
    %46 = vmatprep.subr.mxu0 0.0
    %47 = vmatpush1.msra.mxu0 %v37
    %48 = vmatprep.subr.mxu0 0.0
    %49 = vmatpush1.msra.mxu0 %v38
    %50 = vmatprep.subr.mxu0 0.0
    %51 = vmatpush1.msra.mxu0 %v39
    %52 = vmatprep.subr.mxu0 0.0
    %53 = vmatpush1.msra.mxu0 0.0
    %54 = vmatprep.subr.mxu0 0.0
    %55 = vmatpush1.msra.mxu0 0.0
    %56 = vmatprep.subr.mxu0 0.0
    %57 = vmatpush1.msra.mxu0 0.0
    %58 = vmatprep.subr.mxu0 0.0
    %59 = vmatpush1.msra.mxu0 0.0
    %60 = vmatprep.subr.mxu0 0.0
    %61 = vmatpush1.msra.mxu0 0.0
    %62 = vmatprep.subr.mxu0 0.0
    %63 = vmatpush1.msra.mxu0 0.0
    %64 = vmatprep.subr.mxu0 0.0
    %65 = vmatpush1.msra.mxu0 0.0
    %66 = vmatprep.subr.mxu0 0.0
    %67 = vmatpush1.msra.mxu0 0.0
    %68 = vmatprep.subr.mxu0 0.0
    %69 = vmatpush1.msra.mxu0 0.0
    %70 = vmatprep.subr.mxu0 0.0
    %71 = vmatpush1.msra.mxu0 0.0
    %72 = vmatprep.subr.mxu0 0.0
    %73 = vmatpush1.msra.mxu0 0.0
    %74 = vmatprep.subr.mxu0 0.0
    %75 = vmatpush1.msra.mxu0 0.0
    %76 = vmatprep.subr.mxu0 0.0
    %77 = vmatpush1.msra.mxu0 0.0
    %78 = vmatprep.subr.mxu0 0.0
    %79 = vmatpush1.msra.mxu0 0.0
    %80 = vmatprep.subr.mxu0 0.0
    %81 = vmatpush1.msra.mxu0 0.0
    %82 = vmatprep.subr.mxu0 0.0
    %83 = vmatpush1.msra.mxu0 0.0
    %84 = vmatprep.subr.mxu0 0.0
    %85 = vmatpush1.msra.mxu0 0.0
    %86 = vmatprep.subr.mxu0 0.0
    %87 = vmatpush1.msra.mxu0 0.0
    %88 = vmatprep.subr.mxu0 0.0
    %89 = vmatpush1.msra.mxu0 0.0
    %90 = vmatprep.subr.mxu0 0.0
    %91 = vmatpush1.msra.mxu0 0.0
    %92 = vmatprep.subr.mxu0 0.0
    %93 = vmatpush1.msra.mxu0 0.0
    %94 = vmatprep.subr.mxu0 0.0
    %95 = vmatpush1.msra.mxu0 0.0
    %96 = vmatprep.subr.mxu0 0.0
    %97 = vmatpush1.msra.mxu0 0.0
    %98 = vmatprep.subr.mxu0 0.0
    %99 = vmatpush1.msra.mxu0 0.0
    %100 = vmatprep.subr.mxu0 0.0
    %101 = vmatpush1.msra.mxu0 0.0
    %102 = vmatprep.subr.mxu0 0.0
    %103 = vmatpush1.msra.mxu0 0.0
    %104 = vmatprep.subr.mxu0 0.0
    %105 = vmatpush1.msra.mxu0 0.0
    %106 = vmatprep.subr.mxu0 0.0
    %107 = vmatpush1.msra.mxu0 0.0
    %108 = vmatprep.mubr.f32.mxu0 0.0
    %109 = vmatmul.mubr.f32.gmra.mrb[0].mxu0 %v42
    %v110 = vpop.f32.mrb[0].mxu0
    %v111 = vadd.f32 0.0, %v110
    %v112 = vpop.f32.mrb[0].mxu0
    %113 = vdwg.mxu0
    %v114 = vld [vmem:[%s2] sm:$0x1]
    %v115 = vadd.f32 %v111, %v114
    %v116 = vxor.u32 %v115, 2147483648
    %v117 = vmul.f32 %v116, 1.442695
    %v118 = vpow.pop %v117
    %v119 = vadd.f32 %v118, 1.0
    %v120 = vrcp.pop %v119
    %v121 = vmul.f32 1.0, %v120
    %v123 = vlaneseq
    %v124 = vshrl.u32 %v123, 7
    %v125 = vsub.s32 0, %v124
    %v126 = vrot.slane %v114, %v125
    %127 = vrot.lane.b32.xlu0 %v126, 32
    %v128 = vpop.permute.xlu0 %127
    %v130 = vmul.f32 %v121, %v128
    %132 = vrot.lane.b32.xlu0 %v130, 64
    %v133 = vpop.permute.xlu0 %132
    %v135 = vadd.f32 %v115, %v133
    %v136 = vtanh.pop %v135
    %v137 = vsub.f32 1.0, %v121
    %139 = vrot.lane.b32.xlu0 %v136, 96
    %v140 = vpop.permute.xlu0 %139
    %v142 = vmul.f32 %v137, %v140
    %s143 = scalar_lea.vmem [#allocation2], 32
    %v144 = vld [vmem:[%s143] sm:$0xff]
    %v145 = vld [vmem:[%s143 + $0x8] sm:$0xff]
    %v146 = vld [vmem:[%s143 + $0x10] sm:$0xff]
    %v147 = vld [vmem:[%s143 + $0x18] sm:$0xff]
    %149 = vrot.lane.b32.xlu0 %v142, 96
    %v150 = vpop.permute.xlu0 %149
    %v151 = vsel %vm40, %v150, 0
    %153 = vmatprep.subr.mxu0 0.0
    %154 = vmatpush1.msra.mxu0 %v144
    %155 = vmatprep.subr.mxu0 0.0
    %156 = vmatpush1.msra.mxu0 %v145
    %157 = vmatprep.subr.mxu0 0.0
    %158 = vmatpush1.msra.mxu0 %v146
    %159 = vmatprep.subr.mxu0 0.0
    %160 = vmatpush1.msra.mxu0 %v147
    %161 = vmatprep.subr.mxu0 0.0
    %162 = vmatpush1.msra.mxu0 0.0
    %163 = vmatprep.subr.mxu0 0.0
    %164 = vmatpush1.msra.mxu0 0.0
    %165 = vmatprep.subr.mxu0 0.0
    %166 = vmatpush1.msra.mxu0 0.0
    %167 = vmatprep.subr.mxu0 0.0
    %168 = vmatpush1.msra.mxu0 0.0
    %169 = vmatprep.subr.mxu0 0.0
    %170 = vmatpush1.msra.mxu0 0.0
    %171 = vmatprep.subr.mxu0 0.0
    %172 = vmatpush1.msra.mxu0 0.0
    %173 = vmatprep.subr.mxu0 0.0
    %174 = vmatpush1.msra.mxu0 0.0
    %175 = vmatprep.subr.mxu0 0.0
    %176 = vmatpush1.msra.mxu0 0.0
    %177 = vmatprep.subr.mxu0 0.0
    %178 = vmatpush1.msra.mxu0 0.0
    %179 = vmatprep.subr.mxu0 0.0
    %180 = vmatpush1.msra.mxu0 0.0
    %181 = vmatprep.subr.mxu0 0.0
    %182 = vmatpush1.msra.mxu0 0.0
    %183 = vmatprep.subr.mxu0 0.0
    %184 = vmatpush1.msra.mxu0 0.0
    %185 = vmatprep.subr.mxu0 0.0
    %186 = vmatpush1.msra.mxu0 0.0
    %187 = vmatprep.subr.mxu0 0.0
    %188 = vmatpush1.msra.mxu0 0.0
    %189 = vmatprep.subr.mxu0 0.0
    %190 = vmatpush1.msra.mxu0 0.0
    %191 = vmatprep.subr.mxu0 0.0
    %192 = vmatpush1.msra.mxu0 0.0
    %193 = vmatprep.subr.mxu0 0.0
    %194 = vmatpush1.msra.mxu0 0.0
    %195 = vmatprep.subr.mxu0 0.0
    %196 = vmatpush1.msra.mxu0 0.0
    %197 = vmatprep.subr.mxu0 0.0
    %198 = vmatpush1.msra.mxu0 0.0
    %199 = vmatprep.subr.mxu0 0.0
    %200 = vmatpush1.msra.mxu0 0.0
    %201 = vmatprep.subr.mxu0 0.0
    %202 = vmatpush1.msra.mxu0 0.0
    %203 = vmatprep.subr.mxu0 0.0
    %204 = vmatpush1.msra.mxu0 0.0
    %205 = vmatprep.subr.mxu0 0.0
    %206 = vmatpush1.msra.mxu0 0.0
    %207 = vmatprep.subr.mxu0 0.0
    %208 = vmatpush1.msra.mxu0 0.0
    %209 = vmatprep.subr.mxu0 0.0
    %210 = vmatpush1.msra.mxu0 0.0
    %211 = vmatprep.subr.mxu0 0.0
    %212 = vmatpush1.msra.mxu0 0.0
    %213 = vmatprep.subr.mxu0 0.0
    %214 = vmatpush1.msra.mxu0 0.0
    %215 = vmatprep.subr.mxu0 0.0
    %216 = vmatpush1.msra.mxu0 0.0
    %217 = vmatprep.mubr.f32.mxu0 0.0
    %218 = vmatmul.mubr.f32.gmra.mrb[0].mxu0 %v151
    %v219 = vpop.f32.mrb[0].mxu0
    %v220 = vadd.f32 0.0, %v219
    %v221 = vpop.f32.mrb[0].mxu0
    %222 = vdwg.mxu0
    %s223 = scalar_lea.vmem %s2, 1
    %v224 = vld [vmem:[%s223] sm:$0x1]
    %v225 = vadd.f32 %v220, %v224
    %v226 = vxor.u32 %v225, 2147483648
    %v227 = vmul.f32 %v226, 1.442695
    %v228 = vpow.pop %v227
    %v229 = vadd.f32 %v228, 1.0
    %v230 = vrcp.pop %v229
    %v231 = vmul.f32 1.0, %v230
    %v233 = vlaneseq
    %v234 = vshrl.u32 %v233, 7
    %v235 = vsub.s32 0, %v234
    %v236 = vrot.slane %v224, %v235
    %237 = vrot.lane.b32.xlu0 %v236, 32
    %v238 = vpop.permute.xlu0 %237
    %v240 = vmul.f32 %v231, %v238
    %242 = vrot.lane.b32.xlu0 %v240, 64
    %v243 = vpop.permute.xlu0 %242
    %v245 = vadd.f32 %v225, %v243
    %v246 = vtanh.pop %v245
    %v247 = vsub.f32 1.0, %v231
    %249 = vrot.lane.b32.xlu0 %v246, 96
    %v250 = vpop.permute.xlu0 %249
    %v252 = vmul.f32 %v247, %v250
    %v253 = vld [vmem:[%s3] sm:$0xff]
    %v254 = vld [vmem:[%s3 + $0x8] sm:$0xff]
    %v255 = vld [vmem:[%s3 + $0x10] sm:$0xff]
    %v256 = vld [vmem:[%s3 + $0x18] sm:$0xff]
    %v257 = vld [vmem:[%s4] sm:$0x1]
    %259 = vrot.lane.b32.xlu0 %v252, 96
    %v260 = vpop.permute.xlu0 %259
    %v261 = vsel %vm40, %v260, 0
    %263 = vmatprep.subr.mxu0 0.0
    %264 = vmatpush1.msra.mxu0 %v253
    %265 = vmatprep.subr.mxu0 0.0
    %266 = vmatpush1.msra.mxu0 %v254
    %267 = vmatprep.subr.mxu0 0.0
    %268 = vmatpush1.msra.mxu0 %v255
    %269 = vmatprep.subr.mxu0 0.0
    %270 = vmatpush1.msra.mxu0 %v256
    %271 = vmatprep.subr.mxu0 0.0
    %272 = vmatpush1.msra.mxu0 0.0
    %273 = vmatprep.subr.mxu0 0.0
    %274 = vmatpush1.msra.mxu0 0.0
    %275 = vmatprep.subr.mxu0 0.0
    %276 = vmatpush1.msra.mxu0 0.0
    %277 = vmatprep.subr.mxu0 0.0
    %278 = vmatpush1.msra.mxu0 0.0
    %279 = vmatprep.subr.mxu0 0.0
    %280 = vmatpush1.msra.mxu0 0.0
    %281 = vmatprep.subr.mxu0 0.0
    %282 = vmatpush1.msra.mxu0 0.0
    %283 = vmatprep.subr.mxu0 0.0
    %284 = vmatpush1.msra.mxu0 0.0
    %285 = vmatprep.subr.mxu0 0.0
    %286 = vmatpush1.msra.mxu0 0.0
    %287 = vmatprep.subr.mxu0 0.0
    %288 = vmatpush1.msra.mxu0 0.0
    %289 = vmatprep.subr.mxu0 0.0
    %290 = vmatpush1.msra.mxu0 0.0
    %291 = vmatprep.subr.mxu0 0.0
    %292 = vmatpush1.msra.mxu0 0.0
    %293 = vmatprep.subr.mxu0 0.0
    %294 = vmatpush1.msra.mxu0 0.0
    %295 = vmatprep.subr.mxu0 0.0
    %296 = vmatpush1.msra.mxu0 0.0
    %297 = vmatprep.subr.mxu0 0.0
    %298 = vmatpush1.msra.mxu0 0.0
    %299 = vmatprep.subr.mxu0 0.0
    %300 = vmatpush1.msra.mxu0 0.0
    %301 = vmatprep.subr.mxu0 0.0
    %302 = vmatpush1.msra.mxu0 0.0
    %303 = vmatprep.subr.mxu0 0.0
    %304 = vmatpush1.msra.mxu0 0.0
    %305 = vmatprep.subr.mxu0 0.0
    %306 = vmatpush1.msra.mxu0 0.0
    %307 = vmatprep.subr.mxu0 0.0
    %308 = vmatpush1.msra.mxu0 0.0
    %309 = vmatprep.subr.mxu0 0.0
    %310 = vmatpush1.msra.mxu0 0.0
    %311 = vmatprep.subr.mxu0 0.0
    %312 = vmatpush1.msra.mxu0 0.0
    %313 = vmatprep.subr.mxu0 0.0
    %314 = vmatpush1.msra.mxu0 0.0
    %315 = vmatprep.subr.mxu0 0.0
    %316 = vmatpush1.msra.mxu0 0.0
    %317 = vmatprep.subr.mxu0 0.0
    %318 = vmatpush1.msra.mxu0 0.0
    %319 = vmatprep.subr.mxu0 0.0
    %320 = vmatpush1.msra.mxu0 0.0
    %321 = vmatprep.subr.mxu0 0.0
    %322 = vmatpush1.msra.mxu0 0.0
    %323 = vmatprep.subr.mxu0 0.0
    %324 = vmatpush1.msra.mxu0 0.0
    %325 = vmatprep.subr.mxu0 0.0
    %326 = vmatpush1.msra.mxu0 0.0
    %327 = vmatprep.mubr.f32.mxu0 0.0
    %328 = vmatmul.mubr.f32.gmra.mrb[0].mxu0 %v261
    %v329 = vpop.f32.mrb[0].mxu0
    %v330 = vadd.f32 %v257, %v329
    %v331 = vpop.f32.mrb[0].mxu0
    %332 = vdwg.mxu0
    %335 = vrot.lane.b32.xlu0 %v330, 64
    %v336 = vpop.permute.xlu0 %335
    %v338 = vsel %vm40, %v150, %v252
    %vm339 = vcmask 523264
    %v340 = vsel %vm339, %v338, %v336
    %vm341 = vcmask 654336
    %v342 = vsel %vm341, %v340, 0.0
    %343 = vst [vmem:[#allocation5] sm:$0x1] %v342
    // Predicated region
    $region26: #{tpu_custom_call.1} parent=1 // pred_check
      _
    $region27: #{tpu_custom_call.1} parent=1 // pred_check_branch
      %345 = sbr.rel (0) target = $region29
    $region28: #{tpu_custom_call.1} parent=1 // pred_region
      %s347 = ssub.s32 16, 16
      %348 = vsyncadd [#allocation4], %s347
      %s350 = sshll.u32 [#allocation5], 4
      %s351 = int_to_ptr.vmem [resolvable:$true] %s350
      %353 = dma.vmem_to_hbm [thread:$0]  %s351, 16, %s5, [#allocation4]
    $region29: #{tpu_custom_call.1} parent=1 // pred_fallthru
      _
    // Predicated region
    $region30: #{tpu_custom_call.1} parent=1 // pred_check
      _
    $region31: #{tpu_custom_call.1} parent=1 // pred_check_branch
      %355 = sbr.rel (0) target = $region33
    $region32: #{tpu_custom_call.1} parent=1 // pred_region
      %356 = dma.done [#allocation4], 16
    $region33: #{tpu_custom_call.1} parent=1 // pred_fallthru
      _
    %357 = vsyncpa [#allocation3], 1
    %358 = vsyncpa [#allocation4], 1

</llo_original>
